<compile_context>
chip_gen: v7x
topology: tpu7x:2x2x1
jax: 0.10.0
libtpu: 0.0.40
codegen_flags: <defaults>
</compile_context>

<pallas_src>
import jax
import jax.numpy as jnp
from jax.experimental import pallas as pl
from jax.experimental.pallas import tpu as pltpu

NUM_INPUTS = 14
NUM_OUTPUTS = 1


def linear_kernel(x_ref, w_ref, b_ref, o_ref):
    # x_ref: (F, TB) f32  -- batch on lanes (lane-dense)
    # w_ref: (F, 1)  f32  -- resident across grid steps (constant index_map)
    # b_ref: (1, 1)  f32  -- resident across grid steps
    # o_ref: (1, TB) f32  -- lane-dense output block (unmasked full-width stores)
    prod = x_ref[...] * w_ref[...]                    # VPU mul (lane-broadcast of w)
    acc = jnp.sum(prod, axis=0, keepdims=True)        # sublane reduce over F=14 (XLU)
    o_ref[...] = (acc + b_ref[...]).astype(o_ref.dtype)


def _round_up(n, m):
    return ((n + m - 1) // m) * m


def linear_forward(x, weight, bias, *, block_b=8192):
    """x: (B, F); weight: (O, F) [PyTorch convention]; bias: (O,). Returns (B, O)."""
    B, F = x.shape
    O = weight.shape[0]
    assert O == 1, "kernel is specialized for num_outputs == 1"

    # --- wrapper-side re-layout (plain JAX glue) ---
    x_t = x.T                          # (F, B): batch -> lane axis
    w_col = weight.T                   # (F, 1)
    b2d = bias.reshape(1, O)           # (1, 1)

    # Batch tile: multiple of 128 lanes, capped by block_b; pad batch to a
    # multiple of the tile so every block is full-width (no masked stores).
    TB = min(block_b, _round_up(B, 128))
    B_pad = pl.cdiv(B, TB) * TB
    if B_pad != B:
        x_t = jnp.pad(x_t, ((0, 0), (0, B_pad - B)))
    grid = (B_pad // TB,)

    out = pl.pallas_call(
        linear_kernel,
        out_shape=jax.ShapeDtypeStruct((1, B_pad), x.dtype),
        grid_spec=pl.GridSpec(
            grid=grid,
            in_specs=[
                pl.BlockSpec((F, TB), lambda i: (0, i)),   # x tile, pipelined over batch
                pl.BlockSpec((F, O), lambda i: (0, 0)),    # weight, resident
                pl.BlockSpec((1, O), lambda i: (0, 0)),    # bias, resident
            ],
            out_specs=pl.BlockSpec((1, TB), lambda i: (0, i)),
        ),
        compiler_params=pltpu.CompilerParams(
            dimension_semantics=("parallel",),             # megacore sharding on v7x
            vmem_limit_bytes=32 * 1024 * 1024,             # tiles are ~0.5 MiB; plenty of headroom (<< 64 MiB v7x)
        ),
        cost_estimate=pl.CostEstimate(
            flops=2 * B * F * O,
            transcendentals=0,
            bytes_accessed=(B_pad * F + B_pad * O + F * O + O) * 4,
        ),
    )(x_t, w_col, b2d)

    # Back to PyTorch's (B, O) layout; drop lane padding.
    return out[0, :B].reshape(B, O)


if __name__ == "__main__":
    key = jax.random.PRNGKey(0)
    kx, kw, kb, kx2 = jax.random.split(key, 4)

    # Deterministic parameter init (mirrors nn.Linear's U(-1/sqrt(fan_in), 1/sqrt(fan_in)))
    bound = 1.0 / jnp.sqrt(jnp.float32(NUM_INPUTS))
    weight = jax.random.uniform(kw, (NUM_OUTPUTS, NUM_INPUTS),
                                minval=-bound, maxval=bound, dtype=jnp.float32)
    bias = jax.random.uniform(kb, (NUM_OUTPUTS,),
                              minval=-bound, maxval=bound, dtype=jnp.float32)

    # Small batch (single grid step, padded to 128 lanes)
    B = 8
    x = jax.random.normal(kx, (B, NUM_INPUTS), dtype=jnp.float32)
    y = linear_forward(x, weight, bias)
    jax.block_until_ready(y)
    y_ref = x @ weight.T + bias
    assert y.shape == (B, NUM_OUTPUTS)
    assert jnp.allclose(y, y_ref, atol=1e-5, rtol=1e-5)

    # Slightly larger batch with a small tile to exercise multi-block
    # pipelining + padding + slicing (grid=(3,), B padded 300 -> 384).
    B2 = 300
    x2 = jax.random.normal(kx2, (B2, NUM_INPUTS), dtype=jnp.float32)
    y2 = linear_forward(x2, weight, bias, block_b=128)
    jax.block_until_ready(y2)
    y2_ref = x2 @ weight.T + bias
    assert y2.shape == (B2, NUM_OUTPUTS)
    assert jnp.allclose(y2, y2_ref, atol=1e-5, rtol=1e-5)

    print("KERNEL_OK")
</pallas_src>

<mosaic_0001>
module attributes {stable_mosaic.version = 11 : i64} {
  func.func @linear_kernel(%arg0: i32, %arg1: memref<14x128xf32, #tpu.memory_space<vmem>>, %arg2: memref<14x1xf32, #tpu.memory_space<vmem>>, %arg3: memref<1x1xf32, #tpu.memory_space<vmem>>, %arg4: memref<1x128xf32, #tpu.memory_space<vmem>>) attributes {dimension_semantics = [#tpu.dimension_semantics<parallel>], iteration_bounds = array<i64: 1>, scalar_prefetch = 0 : i64, scratch_operands = 0 : i64, tpu.core_type = #tpu.core_type<tc>, window_params = [{transform_indices = @transform_0, window_bounds = array<i64: 14, 128>}, {pipeline_mode = #tpu.pipeline_mode<synchronous>, transform_indices = @transform_1, window_bounds = array<i64: 14, 1>}, {pipeline_mode = #tpu.pipeline_mode<synchronous>, transform_indices = @transform_2, window_bounds = array<i64: 1, 1>}, {transform_indices = @transform_3, window_bounds = array<i64: 1, 128>}]} {
    %c0 = arith.constant 0 : index
    %c0_0 = arith.constant 0 : index
    %0 = vector.load %arg1[%c0, %c0_0] : memref<14x128xf32, #tpu.memory_space<vmem>>, vector<14x128xf32>
    %c0_1 = arith.constant 0 : index
    %c0_2 = arith.constant 0 : index
    %1 = vector.load %arg2[%c0_1, %c0_2] : memref<14x1xf32, #tpu.memory_space<vmem>>, vector<14x1xf32>
    %2 = vector.broadcast %1 : vector<14x1xf32> to vector<14x128xf32>
    %3 = arith.mulf %0, %2 : vector<14x128xf32>
    %cst = arith.constant dense<0.000000e+00> : vector<128xf32>
    %4 = vector.multi_reduction <add>, %3, %cst [0] : vector<14x128xf32> to vector<128xf32>
    %5 = vector.shape_cast %4 : vector<128xf32> to vector<1x128xf32>
    %c0_3 = arith.constant 0 : index
    %c0_4 = arith.constant 0 : index
    %6 = vector.load %arg3[%c0_3, %c0_4] : memref<1x1xf32, #tpu.memory_space<vmem>>, vector<1x1xf32>
    %7 = vector.broadcast %6 : vector<1x1xf32> to vector<1x128xf32>
    %8 = arith.addf %5, %7 : vector<1x128xf32>
    %c0_5 = arith.constant 0 : index
    %c0_6 = arith.constant 0 : index
    %9 = vector.load %arg4[%c0_5, %c0_6] : memref<1x128xf32, #tpu.memory_space<vmem>>, vector<1x128xf32>
    tpu.vector_store %arg4[%c0_5, %c0_6], %8 {strides = array<i32>} : memref<1x128xf32, #tpu.memory_space<vmem>>, vector<1x128xf32>,
    return
  }
  func.func @transform_0(%arg0: i32) -> (i32, i32) {
    %c0_i32 = arith.constant 0 : i32
    %c0_i32_0 = arith.constant 0 : i32
    return %c0_i32, %arg0 : i32, i32
  }
  func.func @transform_1(%arg0: i32) -> (i32, i32) {
    %c0_i32 = arith.constant 0 : i32
    %c0_i32_0 = arith.constant 0 : i32
    %c0_i32_1 = arith.constant 0 : i32
    return %c0_i32, %c0_i32_0 : i32, i32
  }
  func.func @transform_2(%arg0: i32) -> (i32, i32) {
    %c0_i32 = arith.constant 0 : i32
    %c0_i32_0 = arith.constant 0 : i32
    %c0_i32_1 = arith.constant 0 : i32
    return %c0_i32, %c0_i32_0 : i32, i32
  }
  func.func @transform_3(%arg0: i32) -> (i32, i32) {
    %c0_i32 = arith.constant 0 : i32
    %c0_i32_0 = arith.constant 0 : i32
    return %c0_i32, %arg0 : i32, i32
  }
}

</mosaic_0001>

<llo_original>
// kernel: tpu_custom_call.1
$region0: #{tpu_custom_call.1}
  #allocation0 [shape = 'u32[]', space=smem, size = 0x4, offset = 0x4, fixed_abs, tag = 'smem constant byte address 0x4 - core index']
  #allocation1 [shape = 'u32[144,128]{1,0:T(1,128)}', space=vmem, size = 0x12000, scoped, tag = 'internal scratch']
  #allocation2 [shape = 'f32[1,1]{1,0:T(1,128)S(1)}', space=vmem, size = 0x200, scoped, tag = 'scoped memory for tpu_custom_call.1']
  %s0 = inlined_call_operand.vmem [shape: f32[14,128], index: 0, kind: input, shape index: {}]
  %s1 = inlined_call_operand.vmem [shape: f32[14,1], index: 1, kind: input, shape index: {}]
  %s2 = inlined_call_operand.<no memory space> [shape: f32[1,1], index: 2, kind: input, shape index: {}]
  %s3 = inlined_call_operand.hbm [shape: f32[1,128], index: 3, kind: output, shape index: {}]
  %s4 = sld [smem:[#allocation0]]
  $region22: #{tpu_custom_call.1} parent=0
    _
  %s6 = ssub.s32 1, %s4
  %s7 = scalar_select 0, %s6, %s4
  %v8 = vstv %s2
  %9 = vst [vmem:[#allocation2] sm:$0x1] %v8
  $region1: #{tpu_custom_call.1} parent=0
    #allocation3 [shape = 'u8[512]{0}', space=vmem, size = 0x400, scoped, tag = 'output window, operand 0, single buffered']
    #allocation4 [shape = 's32[1]{0}', space=sflag, size = 0x4, scoped, tag = 'scoped memory for tpu_custom_call.1']
    %10 = vsyncpa [#allocation4], 0
    // Predicated region
    $region2: #{tpu_custom_call.1} parent=1 // pred_check
      _
    $region3: #{tpu_custom_call.1} parent=1 // pred_check_branch
      %12 = sbr.rel (0) target = $region5
    $region4: #{tpu_custom_call.1} parent=1 // pred_region
      _
    $region5: #{tpu_custom_call.1} parent=1 // pred_fallthru
      _
    // Predicated region
    $region6: #{tpu_custom_call.1} parent=1 // pred_check
      _
    $region7: #{tpu_custom_call.1} parent=1 // pred_check_branch
      %14 = sbr.rel (0) target = $region9
    $region8: #{tpu_custom_call.1} parent=1 // pred_region
      _
    $region9: #{tpu_custom_call.1} parent=1 // pred_fallthru
      _
    // Predicated region
    $region10: #{tpu_custom_call.1} parent=1 // pred_check
      _
    $region11: #{tpu_custom_call.1} parent=1 // pred_check_branch
      %16 = sbr.rel (0) target = $region13
    $region12: #{tpu_custom_call.1} parent=1 // pred_region
      _
    $region13: #{tpu_custom_call.1} parent=1 // pred_fallthru
      _
    %v17 = vld [vmem:[%s0] sm:$0xff]
    %v18 = vld [vmem:[%s0 + $0x8] sm:$0x3f]
    %v19 = vld [vmem:[%s1] sm:$0xff]
    %v20 = vld [vmem:[%s1 + $0x8] sm:$0x3f]
    %22 = vset.pattern.permute.xlu0 0
    %23 = vperm.xlu0 %22, %v19
    %v24 = vpop.permute.xlu0 %23
    %27 = vset.pattern.permute.xlu0 0
    %28 = vperm.xlu0 %27, %v20
    %v29 = vpop.permute.xlu0 %28
    %v31 = vmul.f32 %v17, %v24
    %v32 = vmul.f32 %v18, %v29
    %vm33 = vcmask 1045504
    %v34 = vsel %vm33, %v32, 0.0
    %v35 = vadd.f32 %v31, %v34
    %v36 = vrot.slane %v35, 4
    %v37 = vadd.f32 %v35, %v36
    %v38 = vrot.slane %v37, 2
    %v39 = vadd.f32 %v37, %v38
    %v40 = vrot.slane %v39, 1
    %v41 = vadd.f32 %v39, %v40
    %v42 = vld [vmem:[#allocation2] sm:$0x1]
    %44 = vset.pattern.permute.xlu0 0
    %45 = vperm.xlu0 %44, %v42
    %v46 = vpop.permute.xlu0 %45
    %v48 = vlaneseq
    %v49 = vshrl.u32 %v48, 7
    %v50 = vsub.s32 0, %v49
    %v51 = vrot.slane %v46, %v50
    %v52 = vadd.f32 %v41, %v51
    %53 = vst [vmem:[#allocation3] sm:$0x1] %v52
    // Predicated region
    $region14: #{tpu_custom_call.1} parent=1 // pred_check
      _
    $region15: #{tpu_custom_call.1} parent=1 // pred_check_branch
      %55 = sbr.rel (0) target = $region17
    $region16: #{tpu_custom_call.1} parent=1 // pred_region
      %s57 = ssub.s32 16, 16
      %58 = vsyncadd [#allocation4], %s57
      %s60 = sshll.u32 [#allocation3], 4
      %s61 = int_to_ptr.vmem [resolvable:$true] %s60
      %63 = dma.vmem_to_hbm [thread:$0]  %s61, 16, %s3, [#allocation4]
    $region17: #{tpu_custom_call.1} parent=1 // pred_fallthru
      _
    // Predicated region
    $region18: #{tpu_custom_call.1} parent=1 // pred_check
      _
    $region19: #{tpu_custom_call.1} parent=1 // pred_check_branch
      %65 = sbr.rel (0) target = $region21
    $region20: #{tpu_custom_call.1} parent=1 // pred_region
      %66 = dma.done [#allocation4], 16
    $region21: #{tpu_custom_call.1} parent=1 // pred_fallthru
      _
    %67 = vsyncpa [#allocation4], 1

</llo_original>
